<compile_context>
chip_gen: v6e
topology: v6e:2x2x1
jax: 0.10.0
libtpu: 0.0.40
codegen_flags: <defaults>
</compile_context>

<pallas_src>
import functools

import jax
import jax.numpy as jnp
import numpy as np
from jax.experimental import pallas as pl
from jax.experimental.pallas import tpu as pltpu


def _make_kernel(task_types, n_pre_rows, n_tiles, block_b, batch):
    """Builds the kernel body. Only Python scalars are closed over (no array
    constants), so the traced kernel captures nothing."""
    for t in task_types:
        if t not in ('classification', 'regression'):
            raise ValueError(f'Unsupported task type: {t}')
    has_cls = any(t == 'classification' for t in task_types)
    has_reg = any(t == 'regression' for t in task_types)
    n_tasks = len(task_types)

    def kernel(pre_ref, truth_ref, mask_ref, num_ref, nv_ref):
        c = pl.program_id(0)   # core-split axis ("parallel")
        j = pl.program_id(1)   # batch-tile reduction axis ("arbitrary")

        @pl.when(j == 0)
        def _():
            num_ref[...] = jnp.zeros_like(num_ref)
            nv_ref[...] = jnp.zeros_like(nv_ref)

        # Tail / overhang masking. The *requested* (pre-clamp) tile start decides
        # which lanes are real batch columns; out-of-bounds VMEM contents are
        # unchecked garbage, so zero them with where() before any math.
        col0 = (c * n_tiles + j) * block_b
        lane = jax.lax.broadcasted_iota(jnp.int32, (1, block_b), 1)
        valid = (col0 + lane) < batch                                        # [1, BT]

        pre = jnp.where(valid, pre_ref[...].astype(jnp.float32), 0.0)        # [R, BT]
        truth = jnp.where(valid, truth_ref[...].astype(jnp.float32), 0.0)    # [T, BT]
        mask = jnp.where(valid, mask_ref[...].astype(jnp.float32), 0.0)      # [T, BT]

        # Label-independent column sums, computed once per tile:
        #   BCE(x, y) summed over rows = S1 - y * S2
        #   MSE(x, y) summed over rows = Q - 2*y*S2 + R*y^2
        s2 = jnp.sum(pre, axis=0, keepdims=True)                             # [1, BT]
        if has_cls:
            s1 = jnp.sum(jnp.maximum(pre, 0.0)
                         + jnp.log(1.0 + jnp.exp(-jnp.abs(pre))),
                         axis=0, keepdims=True)                              # [1, BT]
        if has_reg:
            q = jnp.sum(pre * pre, axis=0, keepdims=True)                    # [1, BT]

        if has_cls and has_reg:
            # Mixed task set: per-row classification/regression selector built
            # in-kernel from an iota (no captured constants).
            tid = jax.lax.broadcasted_iota(jnp.int32, (n_tasks, 1), 0)       # [T, 1]
            cls_sel = tid < 0                                                # all False
            for t, tt in enumerate(task_types):
                if tt == 'classification':
                    cls_sel = jnp.logical_or(cls_sel, tid == t)
            cls_rows = s1 - truth * s2                                       # [T, BT]
            reg_rows = (q - 2.0 * truth * s2
                        + float(n_pre_rows) * truth * truth)                 # [T, BT]
            rows = jnp.where(cls_sel, cls_rows, reg_rows)
        elif has_cls:
            rows = s1 - truth * s2
        else:
            rows = q - 2.0 * truth * s2 + float(n_pre_rows) * truth * truth

        # Per-lane partial accumulation into the resident output blocks.
        num_ref[...] += (mask * rows)[None, :, :]                            # [1, T, BT]
        nv_ref[...] += mask[None, :, :]                                      # [1, T, BT]

    return kernel


@functools.partial(jax.jit, static_argnames=('task_types', 'block_b', 'num_splits'))
def ple_loss(pre_value, truth_value, masks, weights, *, task_types,
             block_b=16384, num_splits=1):
    """pre_value: [R, B] stacked per-task predictions; truth_value, masks: [B, T]
    (PyTorch layout); weights: [T]. Returns the scalar weighted loss.

    Tuning: num_splits=1 on single-TensorCore v5e/v6e; num_splits=2 (megacore)
    and block_b up to 32768-65536 on v7x / for very large batches."""
    n_rows, batch = pre_value.shape
    n_tasks = min(len(task_types), n_rows)          # zip() truncation semantics
    tasks = tuple(task_types[:n_tasks])

    # Task-major views of truth/masks. allow_input_fusion lets XLA fuse these
    # transposes into the pallas_call operands instead of materializing standalone
    # HBM copies.
    truth_t = jnp.transpose(truth_value)[:n_tasks]
    masks_t = jnp.transpose(masks)[:n_tasks]

    # Lane-dense tile, multiple of 128; do not overshoot tiny batches.
    block_b = max(128, (block_b // 128) * 128)
    block_b = min(block_b, ((batch + 127) // 128) * 128)

    n_blocks = -(-batch // block_b)                 # ceil
    num_splits = max(1, min(num_splits, n_blocks))
    n_tiles = -(-n_blocks // num_splits)            # tiles per core split
    last_blk = n_blocks - 1

    # Clamp so fully-overhanging tiles re-read the last valid block; their
    # contribution is zeroed in-kernel via the requested-start lane mask.
    def in_map(c, j):
        return (0, jnp.minimum(c * n_tiles + j, last_blk))

    def out_map(c, j):
        return (c, 0, 0)

    kernel = _make_kernel(tasks, n_rows, n_tiles, block_b, batch)

    bytes_accessed = ((n_rows + 2 * n_tasks) * batch * 4
                      + 2 * num_splits * n_tasks * block_b * 4)
    cost = pl.CostEstimate(
        flops=(4 * n_rows + 8 * n_tasks) * batch,
        transcendentals=2 * n_rows * batch,
        bytes_accessed=bytes_accessed,
    )

    num, nv = pl.pallas_call(
        kernel,
        out_shape=(
            jax.ShapeDtypeStruct((num_splits, n_tasks, block_b), jnp.float32),
            jax.ShapeDtypeStruct((num_splits, n_tasks, block_b), jnp.float32),
        ),
        grid_spec=pltpu.PrefetchScalarGridSpec(
            num_scalar_prefetch=0,
            grid=(num_splits, n_tiles),
            in_specs=[
                pl.BlockSpec((n_rows, block_b), in_map),     # pre    [R, BT]
                pl.BlockSpec((n_tasks, block_b), in_map),    # truth  [T, BT]
                pl.BlockSpec((n_tasks, block_b), in_map),    # masks  [T, BT]
            ],
            out_specs=[
                pl.BlockSpec((1, n_tasks, block_b), out_map),   # numerator partials
                pl.BlockSpec((1, n_tasks, block_b), out_map),   # n_valid partials
            ],
        ),
        compiler_params=pltpu.CompilerParams(
            dimension_semantics=("parallel", "arbitrary"),
            allow_input_fusion=[False, True, True],
        ),
        cost_estimate=cost,
    )(pre_value, truth_t, masks_t)

    # Tiny [T]-sized finalize (fused by XLA): global reduce over core splits and
    # lanes, the valid_samples==0 "continue", the divide, and the per-task weights.
    num_t = jnp.sum(num, axis=(0, 2))               # [T]
    nv_t = jnp.sum(nv, axis=(0, 2))                 # [T]
    safe = jnp.where(nv_t == 0.0, 1.0, nv_t)
    per_task = jnp.where(nv_t == 0.0, 0.0, num_t / safe)
    return jnp.sum(per_task * weights[:n_tasks].astype(jnp.float32))


def ple_loss_ref(pre_value, truth_value, masks, weights, task_types):
    """Pure NumPy reference mirroring the PyTorch forward exactly."""
    pre = np.asarray(pre_value, np.float32)
    truth = np.asarray(truth_value, np.float32)
    m = np.asarray(masks, np.float32)
    w = np.asarray(weights, np.float32)
    total = 0.0
    for t, task_type in enumerate(task_types[:pre.shape[0]]):
        label = truth[:, t]
        mask = m[:, t]
        n_valid = mask.sum()
        if n_valid == 0:
            continue
        if task_type == 'classification':
            x = pre
            loss = np.maximum(x, 0.0) - x * label[None, :] + np.log1p(np.exp(-np.abs(x)))
        else:
            loss = (pre - label[None, :]) ** 2
        total += (loss * mask[None, :]).sum() / n_valid * w[t]
    return np.float32(total)


if __name__ == "__main__":
    # TODO(synk): weight_manager.get_weights() has no Pallas equivalent; the per-task
    # weights are passed in as a plain [T] array.
    task_types = ('classification', 'regression', 'classification')
    T = len(task_types)
    B = 600   # non-multiple of the tile -> exercises the in-kernel tail masking

    key = jax.random.PRNGKey(0)
    k1, k2, k3, k4 = jax.random.split(key, 4)

    # pre_value: stacked per-task predictions (what PyTorch zips over), [T, B]
    pre_value = jax.random.normal(k1, (T, B), dtype=jnp.float32)

    # truth_value: [B, T]; binary columns for classification, continuous for regression
    bin_labels = (jax.random.uniform(k2, (B, T)) > 0.5).astype(jnp.float32)
    cont_labels = jax.random.normal(k3, (B, T), dtype=jnp.float32)
    is_reg = jnp.array([tt == 'regression' for tt in task_types])[None, :]
    truth_value = jnp.where(is_reg, cont_labels, bin_labels)

    # masks: [B, T] binary validity masks
    masks = (jax.random.uniform(k4, (B, T)) > 0.3).astype(jnp.float32)

    # deterministic stand-in for weight_manager.get_weights()
    weights = jnp.array([1.0, 0.5, 2.0], dtype=jnp.float32)

    # Small block + 2 splits so multi-tile accumulation, the ragged tail and a
    # fully-overhanging (clamped + masked) tile are all exercised.
    out = ple_loss(pre_value, truth_value, masks, weights,
                   task_types=task_types, block_b=256, num_splits=2)
    out = jax.block_until_ready(out)

    ref = ple_loss_ref(np.array(pre_value), np.array(truth_value),
                       np.array(masks), np.array(weights), task_types)
    assert np.allclose(np.array(out), ref, rtol=1e-4, atol=1e-4), (float(out), float(ref))
    print("KERNEL_OK")
</pallas_src>

<mosaic_0001>
module attributes {stable_mosaic.version = 11 : i64} {
  func.func @kernel(%arg0: i32, %arg1: i32, %arg2: memref<3x256xf32, #tpu.memory_space<vmem>>, %arg3: memref<3x256xf32, #tpu.memory_space<vmem>>, %arg4: memref<3x256xf32, #tpu.memory_space<vmem>>, %arg5: memref<1x3x256xf32, #tpu.memory_space<vmem>>, %arg6: memref<1x3x256xf32, #tpu.memory_space<vmem>>) attributes {dimension_semantics = [#tpu.dimension_semantics<parallel>, #tpu.dimension_semantics<arbitrary>], iteration_bounds = array<i64: 2, 2>, scalar_prefetch = 0 : i64, scratch_operands = 0 : i64, tpu.core_type = #tpu.core_type<tc>, window_params = [{transform_indices = @transform_0, window_bounds = array<i64: 3, 256>}, {transform_indices = @transform_1, window_bounds = array<i64: 3, 256>}, {transform_indices = @transform_2, window_bounds = array<i64: 3, 256>}, {transform_indices = @transform_3, window_bounds = array<i64: 1, 3, 256>}, {transform_indices = @transform_4, window_bounds = array<i64: 1, 3, 256>}]} {
    %c0_i32 = arith.constant 0 : i32
    %0 = arith.cmpi eq, %arg1, %c0_i32 : i32
    %1 = arith.extui %0 : i1 to i32
    %c0_i32_0 = arith.constant 0 : i32
    %2 = arith.cmpi ne, %1, %c0_i32_0 : i32
    scf.if %2 {
      %cst_31 = arith.constant 0.000000e+00 : f32
      %78 = vector.broadcast %cst_31 : f32 to vector<1x3x256xf32>
      %c0_32 = arith.constant 0 : index
      %c0_33 = arith.constant 0 : index
      %c0_34 = arith.constant 0 : index
      %79 = vector.load %arg5[%c0_32, %c0_33, %c0_34] : memref<1x3x256xf32, #tpu.memory_space<vmem>>, vector<1x3x256xf32>
      tpu.vector_store %arg5[%c0_32, %c0_33, %c0_34], %78 {strides = array<i32>} : memref<1x3x256xf32, #tpu.memory_space<vmem>>, vector<1x3x256xf32>,
      %cst_35 = arith.constant 0.000000e+00 : f32
      %80 = vector.broadcast %cst_35 : f32 to vector<1x3x256xf32>
      %c0_36 = arith.constant 0 : index
      %c0_37 = arith.constant 0 : index
      %c0_38 = arith.constant 0 : index
      %81 = vector.load %arg6[%c0_36, %c0_37, %c0_38] : memref<1x3x256xf32, #tpu.memory_space<vmem>>, vector<1x3x256xf32>
      tpu.vector_store %arg6[%c0_36, %c0_37, %c0_38], %80 {strides = array<i32>} : memref<1x3x256xf32, #tpu.memory_space<vmem>>, vector<1x3x256xf32>,
    } else {
    }
    %c2_i32 = arith.constant 2 : i32
    %3 = arith.muli %arg0, %c2_i32 : i32
    %4 = arith.addi %3, %arg1 : i32
    %c256_i32 = arith.constant 256 : i32
    %5 = arith.muli %4, %c256_i32 : i32
    %6 = tpu.iota {dimensions = array<i32: 1>} : vector<1x256xi32>
    %7 = vector.broadcast %5 : i32 to vector<1x256xi32>
    %8 = arith.addi %7, %6 : vector<1x256xi32>
    %c600_i32 = arith.constant 600 : i32
    %9 = vector.broadcast %c600_i32 : i32 to vector<1x256xi32>
    %10 = arith.cmpi slt, %8, %9 : vector<1x256xi32>
    %c0 = arith.constant 0 : index
    %c0_1 = arith.constant 0 : index
    %11 = vector.load %arg2[%c0, %c0_1] : memref<3x256xf32, #tpu.memory_space<vmem>>, vector<3x256xf32>
    %cst = arith.constant 0.000000e+00 : f32
    %12 = vector.shape_cast %10 : vector<1x256xi1> to vector<1x256xi1>
    %13 = vector.broadcast %12 : vector<1x256xi1> to vector<3x256xi1>
    %14 = vector.broadcast %cst : f32 to vector<3x256xf32>
    %15 = arith.select %13, %11, %14 : vector<3x256xi1>, vector<3x256xf32>
    %c0_2 = arith.constant 0 : index
    %c0_3 = arith.constant 0 : index
    %16 = vector.load %arg3[%c0_2, %c0_3] : memref<3x256xf32, #tpu.memory_space<vmem>>, vector<3x256xf32>
    %cst_4 = arith.constant 0.000000e+00 : f32
    %17 = vector.shape_cast %10 : vector<1x256xi1> to vector<1x256xi1>
    %18 = vector.broadcast %17 : vector<1x256xi1> to vector<3x256xi1>
    %19 = vector.broadcast %cst_4 : f32 to vector<3x256xf32>
    %20 = arith.select %18, %16, %19 : vector<3x256xi1>, vector<3x256xf32>
    %c0_5 = arith.constant 0 : index
    %c0_6 = arith.constant 0 : index
    %21 = vector.load %arg4[%c0_5, %c0_6] : memref<3x256xf32, #tpu.memory_space<vmem>>, vector<3x256xf32>
    %cst_7 = arith.constant 0.000000e+00 : f32
    %22 = vector.shape_cast %10 : vector<1x256xi1> to vector<1x256xi1>
    %23 = vector.broadcast %22 : vector<1x256xi1> to vector<3x256xi1>
    %24 = vector.broadcast %cst_7 : f32 to vector<3x256xf32>
    %25 = arith.select %23, %21, %24 : vector<3x256xi1>, vector<3x256xf32>
    %cst_8 = arith.constant dense<0.000000e+00> : vector<256xf32>
    %26 = vector.multi_reduction <add>, %15, %cst_8 [0] : vector<3x256xf32> to vector<256xf32>
    %27 = vector.shape_cast %26 : vector<256xf32> to vector<1x256xf32>
    %cst_9 = arith.constant 0.000000e+00 : f32
    %28 = vector.broadcast %cst_9 : f32 to vector<3x256xf32>
    %29 = arith.maximumf %15, %28 : vector<3x256xf32>
    %30 = math.absf %15 : vector<3x256xf32>
    %cst_10 = arith.constant 0.000000e+00 : f32
    %31 = vector.broadcast %cst_10 : f32 to vector<3x256xf32>
    %32 = arith.subf %31, %30 : vector<3x256xf32>
    %33 = math.exp %32 : vector<3x256xf32>
    %cst_11 = arith.constant 1.000000e+00 : f32
    %34 = vector.broadcast %cst_11 : f32 to vector<3x256xf32>
    %35 = arith.addf %34, %33 : vector<3x256xf32>
    %36 = math.log %35 : vector<3x256xf32>
    %37 = arith.addf %29, %36 : vector<3x256xf32>
    %cst_12 = arith.constant dense<0.000000e+00> : vector<256xf32>
    %38 = vector.multi_reduction <add>, %37, %cst_12 [0] : vector<3x256xf32> to vector<256xf32>
    %39 = vector.shape_cast %38 : vector<256xf32> to vector<1x256xf32>
    %40 = arith.mulf %15, %15 : vector<3x256xf32>
    %cst_13 = arith.constant dense<0.000000e+00> : vector<256xf32>
    %41 = vector.multi_reduction <add>, %40, %cst_13 [0] : vector<3x256xf32> to vector<256xf32>
    %42 = vector.shape_cast %41 : vector<256xf32> to vector<1x256xf32>
    %43 = tpu.iota {dimensions = array<i32: 0>} : vector<3x1xi32>
    %c0_i32_14 = arith.constant 0 : i32
    %44 = vector.broadcast %c0_i32_14 : i32 to vector<3x1xi32>
    %45 = arith.cmpi slt, %43, %44 : vector<3x1xi32>
    %c0_i32_15 = arith.constant 0 : i32
    %46 = vector.broadcast %c0_i32_15 : i32 to vector<3x1xi32>
    %47 = arith.cmpi eq, %43, %46 : vector<3x1xi32>
    %48 = arith.ori %45, %47 : vector<3x1xi1>
    %c2_i32_16 = arith.constant 2 : i32
    %49 = vector.broadcast %c2_i32_16 : i32 to vector<3x1xi32>
    %50 = arith.cmpi eq, %43, %49 : vector<3x1xi32>
    %51 = arith.ori %48, %50 : vector<3x1xi1>
    %52 = vector.broadcast %27 : vector<1x256xf32> to vector<3x256xf32>
    %53 = arith.mulf %20, %52 : vector<3x256xf32>
    %54 = vector.broadcast %39 : vector<1x256xf32> to vector<3x256xf32>
    %55 = arith.subf %54, %53 : vector<3x256xf32>
    %cst_17 = arith.constant 2.000000e+00 : f32
    %56 = vector.broadcast %cst_17 : f32 to vector<3x256xf32>
    %57 = arith.mulf %56, %20 : vector<3x256xf32>
    %58 = vector.broadcast %27 : vector<1x256xf32> to vector<3x256xf32>
    %59 = arith.mulf %57, %58 : vector<3x256xf32>
    %60 = vector.broadcast %42 : vector<1x256xf32> to vector<3x256xf32>
    %61 = arith.subf %60, %59 : vector<3x256xf32>
    %cst_18 = arith.constant 3.000000e+00 : f32
    %62 = vector.broadcast %cst_18 : f32 to vector<3x256xf32>
    %63 = arith.mulf %62, %20 : vector<3x256xf32>
    %64 = arith.mulf %63, %20 : vector<3x256xf32>
    %65 = arith.addf %61, %64 : vector<3x256xf32>
    %66 = vector.shape_cast %51 : vector<3x1xi1> to vector<3x1xi1>
    %67 = vector.broadcast %66 : vector<3x1xi1> to vector<3x256xi1>
    %68 = arith.select %67, %55, %65 : vector<3x256xi1>, vector<3x256xf32>
    %c0_19 = arith.constant 0 : index
    %c0_20 = arith.constant 0 : index
    %c0_21 = arith.constant 0 : index
    %69 = vector.load %arg5[%c0_19, %c0_20, %c0_21] : memref<1x3x256xf32, #tpu.memory_space<vmem>>, vector<1x3x256xf32>
    %70 = arith.mulf %25, %68 : vector<3x256xf32>
    %71 = vector.shape_cast %70 : vector<3x256xf32> to vector<1x3x256xf32>
    %72 = arith.addf %69, %71 : vector<1x3x256xf32>
    %c0_22 = arith.constant 0 : index
    %c0_23 = arith.constant 0 : index
    %c0_24 = arith.constant 0 : index
    %73 = vector.load %arg5[%c0_22, %c0_23, %c0_24] : memref<1x3x256xf32, #tpu.memory_space<vmem>>, vector<1x3x256xf32>
    tpu.vector_store %arg5[%c0_22, %c0_23, %c0_24], %72 {strides = array<i32>} : memref<1x3x256xf32, #tpu.memory_space<vmem>>, vector<1x3x256xf32>,
    %c0_25 = arith.constant 0 : index
    %c0_26 = arith.constant 0 : index
    %c0_27 = arith.constant 0 : index
    %74 = vector.load %arg6[%c0_25, %c0_26, %c0_27] : memref<1x3x256xf32, #tpu.memory_space<vmem>>, vector<1x3x256xf32>
    %75 = vector.shape_cast %25 : vector<3x256xf32> to vector<1x3x256xf32>
    %76 = arith.addf %74, %75 : vector<1x3x256xf32>
    %c0_28 = arith.constant 0 : index
    %c0_29 = arith.constant 0 : index
    %c0_30 = arith.constant 0 : index
    %77 = vector.load %arg6[%c0_28, %c0_29, %c0_30] : memref<1x3x256xf32, #tpu.memory_space<vmem>>, vector<1x3x256xf32>
    tpu.vector_store %arg6[%c0_28, %c0_29, %c0_30], %76 {strides = array<i32>} : memref<1x3x256xf32, #tpu.memory_space<vmem>>, vector<1x3x256xf32>,
    return
  }
  func.func @transform_0(%arg0: i32, %arg1: i32) -> (i32, i32) {
    %c2_i32 = arith.constant 2 : i32
    %0 = arith.muli %arg0, %c2_i32 : i32
    %1 = arith.addi %0, %arg1 : i32
    %c2_i32_0 = arith.constant 2 : i32
    %2 = arith.minsi %1, %c2_i32_0 : i32
    %c0_i32 = arith.constant 0 : i32
    %c0_i32_1 = arith.constant 0 : i32
    return %c0_i32, %2 : i32, i32
  }
  func.func @transform_1(%arg0: i32, %arg1: i32) -> (i32, i32) {
    %c2_i32 = arith.constant 2 : i32
    %0 = arith.muli %arg0, %c2_i32 : i32
    %1 = arith.addi %0, %arg1 : i32
    %c2_i32_0 = arith.constant 2 : i32
    %2 = arith.minsi %1, %c2_i32_0 : i32
    %c0_i32 = arith.constant 0 : i32
    %c0_i32_1 = arith.constant 0 : i32
    return %c0_i32, %2 : i32, i32
  }
  func.func @transform_2(%arg0: i32, %arg1: i32) -> (i32, i32) {
    %c2_i32 = arith.constant 2 : i32
    %0 = arith.muli %arg0, %c2_i32 : i32
    %1 = arith.addi %0, %arg1 : i32
    %c2_i32_0 = arith.constant 2 : i32
    %2 = arith.minsi %1, %c2_i32_0 : i32
    %c0_i32 = arith.constant 0 : i32
    %c0_i32_1 = arith.constant 0 : i32
    return %c0_i32, %2 : i32, i32
  }
  func.func @transform_3(%arg0: i32, %arg1: i32) -> (i32, i32, i32) {
    %c0_i32 = arith.constant 0 : i32
    %c0_i32_0 = arith.constant 0 : i32
    %c0_i32_1 = arith.constant 0 : i32
    return %arg0, %c0_i32, %c0_i32_0 : i32, i32, i32
  }
  func.func @transform_4(%arg0: i32, %arg1: i32) -> (i32, i32, i32) {
    %c0_i32 = arith.constant 0 : i32
    %c0_i32_0 = arith.constant 0 : i32
    %c0_i32_1 = arith.constant 0 : i32
    return %arg0, %c0_i32, %c0_i32_0 : i32, i32, i32
  }
}

</mosaic_0001>

<llo_original>
// kernel: ple_loss.2
$region0: #{ple_loss.2}
  #allocation0 [shape = 'u32[]', space=smem, size = 0x4, offset = 0x4, fixed_abs, tag = 'smem constant byte address 0x4 - core index']
  #allocation1 [shape = 'u32[144,128]{1,0:T(1,128)}', space=vmem, size = 0x12000, scoped, tag = 'internal scratch']
  %s0 = inlined_call_operand.hbm [shape: f32[3,600], index: 0, kind: input, shape index: {}]
  %s1 = inlined_call_operand.vmem [shape: f32[600,3], index: 1, kind: input, shape index: {}]
  %s2 = inlined_call_operand.hbm [shape: f32[600,3], index: 2, kind: input, shape index: {}]
  %s3 = inlined_call_operand.vmem [shape: f32[2,3,256], index: 3, kind: output, shape index: {0}]
  %s4 = inlined_call_operand.vmem [shape: f32[2,3,256], index: 4, kind: output, shape index: {1}]
  %5 = xla_tuple %s3, %s4
  %s6 = sld [smem:[#allocation0]]
  $region65: #{ple_loss.2} parent=0
    _
  %s8 = ssub.s32 1, %s6
  %s9 = scalar_select 0, %s8, %s6
  $region1: #{ple_loss.2} parent=0
    #allocation2 [shape = 'u8[8192]{0}', space=vmem, size = 0x2000, scoped, tag = 'input window, operand 0']
    #allocation3 [shape = 's32[2]{0}', space=sflag, size = 0x8, scoped, tag = 'scoped memory for ple_loss.2']
    #allocation4 [shape = 'u8[8192]{0}', space=vmem, size = 0x2000, scoped, tag = 'operand span for operand 2']
    #allocation5 [shape = 's32[2]{0}', space=sflag, size = 0x8, scoped, tag = 'scoped memory for ple_loss.2']
    %10 = vsyncpa [#allocation3], 0
    %s11 = scalar_lea.sflag [#allocation3], 1
    %12 = vsyncpa %s11, 0
    %13 = vsyncpa [#allocation5], 0
    %s14 = scalar_lea.sflag [#allocation5], 1
    %15 = vsyncpa %s14, 0
    loop: start=0, step=1, limit=6
    $region2: #{ple_loss.2} parent=1 // loop_pre_header
      _
    $region3: #{ple_loss.2} parent=1 // loop_header
      %s17 = sphi 0, %s21
      %p18 = scmp.ge.s32.totalorder %s17, 6
      %s24 = sphi 0, %s36
      %s25 = sphi 0, %s32
      %s26 = sphi 0, %s24
      %s27 = sphi 0, %s25
      %s28 = sphi 0, %s26
      %s29 = sphi 0, %s27
      %s47 = sphi 0, %s49
      %s50 = sphi 0, %s47
      %s51 = sphi 0, %s50
      %s67 = sphi 0, %s51
      %s81 = sphi 0, %s83
      %s84 = sphi 0, %s81
      %s85 = sphi 0, %s84
      %s101 = sphi 0, %s85
      %s115 = sphi 0, %s117
      %s118 = sphi 0, %s115
      %s119 = sphi 0, %s118
      %s135 = sphi 0, %s119
      %s141 = sphi 0, %s143
      %s144 = sphi 0, %s141
      %s145 = sphi 0, %s144
      %s161 = sphi 0, %s145
      %s167 = sphi 0, %s169
      %s170 = sphi 0, %s167
      %s171 = sphi 0, %s170
      %s187 = sphi 0, %s171
    $region4: #{ple_loss.2} parent=1 // loop_header_branch
      %20 = sbr.rel (%p18) target = $region8
    $region5: #{ple_loss.2} parent=1 // loop_body
      %s22 = ssub.s32 %s17, 1
      %s23 = ssub.s32 %s17, 2
      %s30 = sadd.s32 1, %s25
      %p31 = scmp.ge.s32.totalorder %s30, 2
      %s32 = scalar_select %p31, 0, %s30
      %s33 = sadd.s32 1, %s24
      %s34 = scalar_select %p31, %s33, %s24
      %p35 = scmp.ge.s32.totalorder %s34, 2
      %s36 = scalar_select %p35, 0, %s34
      %s37 = smul.u32 %s24, 2
      %s38 = sadd.s32 %s37, %s25
      %p39 = scmp.lt.s32.totalorder %s38, 2
      %s40 = scalar_select %p39, %s38, 2
      %s41 = smul.u32 %s36, 2
      %s42 = sadd.s32 %s41, %s32
      %p43 = scmp.lt.s32.totalorder %s42, 2
      %s44 = scalar_select %p43, %s42, 2
      %s45 = ssub.s32 %s40, %s44
      %p46 = scmp.eq.s32.totalorder %s45, 0
      %s48 = sadd.s32 %s47, 1
      %s49 = scalar_select %p46, %s47, %s48
      %p52 = pneg %p46
      %p53 = scmp.eq.s32.totalorder %s17, 3
      %p54 = por %p52, %p53
      %p55 = scmp.ne.s32.totalorder %s47, %s50
      %p56 = scmp.eq.s32.totalorder %s17, 0
      %p57 = por %p55, %p56
      %p58 = scmp.ne.s32.totalorder %s47, %s50
      %p59 = scmp.eq.s32.totalorder %s22, 3
      %p60 = por %p58, %p59
      %p61 = scmp.ne.s32.totalorder %s50, %s51
      %p62 = scmp.eq.s32.totalorder %s22, 0
      %p63 = por %p61, %p62
      %p64 = scmp.ne.s32.totalorder %s50, %s51
      %p65 = scmp.eq.s32.totalorder %s23, 3
      %p66 = por %p64, %p65
      %p68 = scmp.ne.s32.totalorder %s51, %s67
      %p69 = scmp.eq.s32.totalorder %s23, 0
      %p70 = por %p68, %p69
      %s71 = smul.u32 %s24, 2
      %s72 = sadd.s32 %s71, %s25
      %p73 = scmp.lt.s32.totalorder %s72, 2
      %s74 = scalar_select %p73, %s72, 2
      %s75 = smul.u32 %s36, 2
      %s76 = sadd.s32 %s75, %s32
      %p77 = scmp.lt.s32.totalorder %s76, 2
      %s78 = scalar_select %p77, %s76, 2
      %s79 = ssub.s32 %s74, %s78
      %p80 = scmp.eq.s32.totalorder %s79, 0
      %s82 = sadd.s32 %s81, 1
      %s83 = scalar_select %p80, %s81, %s82
      %p86 = pneg %p80
      %p87 = scmp.eq.s32.totalorder %s17, 3
      %p88 = por %p86, %p87
      %p89 = scmp.ne.s32.totalorder %s81, %s84
      %p90 = scmp.eq.s32.totalorder %s17, 0
      %p91 = por %p89, %p90
      %p92 = scmp.ne.s32.totalorder %s81, %s84
      %p93 = scmp.eq.s32.totalorder %s22, 3
      %p94 = por %p92, %p93
      %p95 = scmp.ne.s32.totalorder %s84, %s85
      %p96 = scmp.eq.s32.totalorder %s22, 0
      %p97 = por %p95, %p96
      %p98 = scmp.ne.s32.totalorder %s84, %s85
      %p99 = scmp.eq.s32.totalorder %s23, 3
      %p100 = por %p98, %p99
      %p102 = scmp.ne.s32.totalorder %s85, %s101
      %p103 = scmp.eq.s32.totalorder %s23, 0
      %p104 = por %p102, %p103
      %s105 = smul.u32 %s24, 2
      %s106 = sadd.s32 %s105, %s25
      %p107 = scmp.lt.s32.totalorder %s106, 2
      %s108 = scalar_select %p107, %s106, 2
      %s109 = smul.u32 %s36, 2
      %s110 = sadd.s32 %s109, %s32
      %p111 = scmp.lt.s32.totalorder %s110, 2
      %s112 = scalar_select %p111, %s110, 2
      %s113 = ssub.s32 %s108, %s112
      %p114 = scmp.eq.s32.totalorder %s113, 0
      %s116 = sadd.s32 %s115, 1
      %s117 = scalar_select %p114, %s115, %s116
      %p120 = pneg %p114
      %p121 = scmp.eq.s32.totalorder %s17, 3
      %p122 = por %p120, %p121
      %p123 = scmp.ne.s32.totalorder %s115, %s118
      %p124 = scmp.eq.s32.totalorder %s17, 0
      %p125 = por %p123, %p124
      %p126 = scmp.ne.s32.totalorder %s115, %s118
      %p127 = scmp.eq.s32.totalorder %s22, 3
      %p128 = por %p126, %p127
      %p129 = scmp.ne.s32.totalorder %s118, %s119
      %p130 = scmp.eq.s32.totalorder %s22, 0
      %p131 = por %p129, %p130
      %p132 = scmp.ne.s32.totalorder %s118, %s119
      %p133 = scmp.eq.s32.totalorder %s23, 3
      %p134 = por %p132, %p133
      %p136 = scmp.ne.s32.totalorder %s119, %s135
      %p137 = scmp.eq.s32.totalorder %s23, 0
      %p138 = por %p136, %p137
      %s139 = ssub.s32 %s24, %s36
      %p140 = scmp.eq.s32.totalorder %s139, 0
      %s142 = sadd.s32 %s141, 1
      %s143 = scalar_select %p140, %s141, %s142
      %p146 = pneg %p140
      %p147 = scmp.eq.s32.totalorder %s17, 3
      %p148 = por %p146, %p147
      %p149 = scmp.ne.s32.totalorder %s141, %s144
      %p150 = scmp.eq.s32.totalorder %s17, 0
      %p151 = por %p149, %p150
      %p152 = scmp.ne.s32.totalorder %s141, %s144
      %p153 = scmp.eq.s32.totalorder %s22, 3
      %p154 = por %p152, %p153
      %p155 = scmp.ne.s32.totalorder %s144, %s145
      %p156 = scmp.eq.s32.totalorder %s22, 0
      %p157 = por %p155, %p156
      %p158 = scmp.ne.s32.totalorder %s144, %s145
      %p159 = scmp.eq.s32.totalorder %s23, 3
      %p160 = por %p158, %p159
      %p162 = scmp.ne.s32.totalorder %s145, %s161
      %p163 = scmp.eq.s32.totalorder %s23, 0
      %p164 = por %p162, %p163
      %s165 = ssub.s32 %s24, %s36
      %p166 = scmp.eq.s32.totalorder %s165, 0
      %s168 = sadd.s32 %s167, 1
      %s169 = scalar_select %p166, %s167, %s168
      %p172 = pneg %p166
      %p173 = scmp.eq.s32.totalorder %s17, 3
      %p174 = por %p172, %p173
      %p175 = scmp.ne.s32.totalorder %s167, %s170
      %p176 = scmp.eq.s32.totalorder %s17, 0
      %p177 = por %p175, %p176
      %p178 = scmp.ne.s32.totalorder %s167, %s170
      %p179 = scmp.eq.s32.totalorder %s22, 3
      %p180 = por %p178, %p179
      %p181 = scmp.ne.s32.totalorder %s170, %s171
      %p182 = scmp.eq.s32.totalorder %s22, 0
      %p183 = por %p181, %p182
      %p184 = scmp.ne.s32.totalorder %s170, %s171
      %p185 = scmp.eq.s32.totalorder %s23, 3
      %p186 = por %p184, %p185
      %p188 = scmp.ne.s32.totalorder %s171, %s187
      %p189 = scmp.eq.s32.totalorder %s23, 0
      %p190 = por %p188, %p189
      %p191 = scmp.le.s32.totalorder 1, %s17
      %p192 = scmp.lt.s32.totalorder %s17, 5
      %p193 = pnand %p191, %p192
      %p194 = pneg %p193
      // Predicated region
      $region9: #{ple_loss.2} parent=5 // pred_check
        _
      $region10: #{ple_loss.2} parent=5 // pred_check_branch
        %196 = sbr.rel (%p193) target = $region12
      $region11: #{ple_loss.2} parent=5 // pred_region
        %s197 = ssub.s32 %s17, 1
      $region12: #{ple_loss.2} parent=5 // pred_fallthru
        _
      %p198 = scmp.lt.s32.totalorder %s17, 4
      // Predicated region
      $region13: #{ple_loss.2} parent=5 // pred_check
        %p199 = pneg %p198
      $region14: #{ple_loss.2} parent=5 // pred_check_branch
        %201 = sbr.rel (%p199) target = $region16
      $region15: #{ple_loss.2} parent=5 // pred_region
        // Predicated region
        $region17: #{ple_loss.2} parent=15 // pred_check
          %p202 = pneg %p57
        $region18: #{ple_loss.2} parent=15 // pred_check_branch
          %204 = sbr.rel (%p202) target = $region20
        $region19: #{ple_loss.2} parent=15 // pred_region
          %s205 = sand.u32 %s47, 1
          %s206 = scalar_lea.sflag [#allocation3], %s205
          %s207 = sand.u32 %s47, 1
          %s208 = smul.addr %s207, 8
          %s209 = scalar_lea.vmem [#allocation2], %s208
          %s210 = smul.u32 %s24, 2
          %s211 = sadd.s32 %s210, %s25
          %p212 = scmp.lt.s32.totalorder %s211, 2
          %s213 = scalar_select %p212, %s211, 2
          %s214 = smul.u32 2, %s213
          %s215 = ssub.s32 5, %s214
          %p216 = scmp.lt.s32.totalorder %s215, 2
          %s217 = scalar_select %p216, %s215, 2
          %s218 = smul.u32 64, %s217
          %s220 = ssub.s32 128, %s218
          %221 = vsyncadd %s206, %s220
          %p222 = scmp.ne.s32.totalorder 0, %s218
          %s223 = smul.addr %s214, 64
          %s224 = scalar_lea.hbm %s0, %s223
          %s225 = smul.u32 %s217, 4
          %s226 = sshll.u32 %s225, 4
          %s227 = sshll.u32 %s209, 4
          %s228 = int_to_ptr.vmem [resolvable:$true] %s227
          %230 = dma.hbm_to_vmem [thread:$0]  (%p222), %s224, %s226, %s228, %s206
        $region20: #{ple_loss.2} parent=15 // pred_fallthru
          _
        // Predicated region
        $region21: #{ple_loss.2} parent=15 // pred_check
          %p231 = pneg %p91
        $region22: #{ple_loss.2} parent=15 // pred_check_branch
          %233 = sbr.rel (%p231) target = $region24
        $region23: #{ple_loss.2} parent=15 // pred_region
          %s234 = sand.u32 %s81, 1
          %s235 = scalar_lea.sflag [#allocation5], %s234
          %s236 = sand.u32 %s81, 1
          %s237 = smul.addr %s236, 8
          %s238 = scalar_lea.vmem [#allocation4], %s237
          %s239 = smul.u32 %s24, 2
          %s240 = sadd.s32 %s239, %s25
          %p241 = scmp.lt.s32.totalorder %s240, 2
          %s242 = scalar_select %p241, %s240, 2
          %s243 = smul.u32 2, %s242
          %s244 = ssub.s32 5, %s243
          %p245 = scmp.lt.s32.totalorder %s244, 2
          %s246 = scalar_select %p245, %s244, 2
          %s247 = smul.u32 64, %s246
          %s249 = ssub.s32 128, %s247
          %250 = vsyncadd %s235, %s249
          %p251 = scmp.ne.s32.totalorder 0, %s247
          %s252 = smul.addr %s243, 64
          %s253 = scalar_lea.hbm %s2, %s252
          %s254 = smul.u32 %s246, 4
          %s255 = sshll.u32 %s254, 4
          %s256 = sshll.u32 %s238, 4
          %s257 = int_to_ptr.vmem [resolvable:$true] %s256
          %259 = dma.hbm_to_vmem [thread:$0]  (%p251), %s253, %s255, %s257, %s235
        $region24: #{ple_loss.2} parent=15 // pred_fallthru
          _
        // Predicated region
        $region25: #{ple_loss.2} parent=15 // pred_check
          %p260 = pneg %p125
        $region26: #{ple_loss.2} parent=15 // pred_check_branch
          %262 = sbr.rel (%p260) target = $region28
        $region27: #{ple_loss.2} parent=15 // pred_region
          %s263 = smul.u32 %s24, 2
          %s264 = sadd.s32 %s263, %s25
          %p265 = scmp.lt.s32.totalorder %s264, 2
          %s266 = scalar_select %p265, %s264, 2
          %s267 = smul.u32 2, %s266
          %s268 = ssub.s32 5, %s267
          %p269 = scmp.lt.s32.totalorder %s268, 2
          %s270 = scalar_select %p269, %s268, 2
          %s271 = smul.u32 64, %s270
          %p272 = scmp.lt.s32.totalorder %s267, 4
          %s273 = scalar_select %p272, %s267, 4
          %s274 = smul.addr %s273, 4
          %s275 = scalar_lea.vmem %s1, %s274
          %s276 = smul.u32 %s24, 2
          %s277 = sadd.s32 %s276, %s25
          %p278 = scmp.lt.s32.totalorder %s277, 2
          %s279 = scalar_select %p278, %s277, 2
          %s280 = smul.u32 2, %s279
          %s281 = ssub.s32 5, %s280
          %p282 = scmp.lt.s32.totalorder %s281, 2
          %s283 = scalar_select %p282, %s281, 2
          %s284 = smul.u32 64, %s283
        $region28: #{ple_loss.2} parent=15 // pred_fallthru
          _
      $region16: #{ple_loss.2} parent=5 // pred_fallthru
        _
      %p285 = scmp.le.s32.totalorder 1, %s17
      %p286 = scmp.lt.s32.totalorder %s17, 5
      %p287 = pnand %p285, %p286
      %p288 = pneg %p287
      // Predicated region
      $region29: #{ple_loss.2} parent=5 // pred_check
        _
      $region30: #{ple_loss.2} parent=5 // pred_check_branch
        %290 = sbr.rel (%p287) target = $region32
      $region31: #{ple_loss.2} parent=5 // pred_region
        #allocation6 [shape = 'u8[4096]{0}', space=vmem, size = 0x1000, dematerialized = true, scoped, tag = 'FusionAdapter Buffer %fusion.2 = f32[3,600]{1,0:T(4,128)} fusion(%param_2.2), kind=kLoop, calls=%fused_computation.2.clone, metadata={op_name="jit(ple_loss)/transpose" stack_frame_id=10}']
        #allocation7 [shape = 'u8[4096]{0}', space=vmem, size = 0x1000, dematerialized = true, scoped, tag = 'FusionAdapter Buffer %fusion.1 = f32[3,600]{1,0:T(4,128)} fusion(%param_1.1), kind=kLoop, calls=%fused_computation.1.clone, metadata={op_name="jit(ple_loss)/transpose" stack_frame_id=11}']
        %s291 = ssub.s32 %s17, 1
        %s292 = sand.u32 %s50, 1
        %s293 = scalar_lea.sflag [#allocation3], %s292
        %s294 = sand.u32 %s50, 1
        %s295 = smul.addr %s294, 8
        %s296 = scalar_lea.vmem [#allocation2], %s295
        // Predicated region
        $region33: #{ple_loss.2} parent=31 // pred_check
          %p297 = pneg %p63
        $region34: #{ple_loss.2} parent=31 // pred_check_branch
          %299 = sbr.rel (%p297) target = $region36
        $region35: #{ple_loss.2} parent=31 // pred_region
          %300 = dma.done %s293, 128
        $region36: #{ple_loss.2} parent=31 // pred_fallthru
          _
        %s301 = sand.u32 %s84, 1
        %s302 = scalar_lea.sflag [#allocation5], %s301
        %s303 = sand.u32 %s84, 1
        %s304 = smul.addr %s303, 8
        %s305 = scalar_lea.vmem [#allocation4], %s304
        // Predicated region
        $region37: #{ple_loss.2} parent=31 // pred_check
          %p306 = pneg %p97
        $region38: #{ple_loss.2} parent=31 // pred_check_branch
          %308 = sbr.rel (%p306) target = $region40
        $region39: #{ple_loss.2} parent=31 // pred_region
          %309 = dma.done %s302, 128
        $region40: #{ple_loss.2} parent=31 // pred_fallthru
          _
        %s310 = sand.u32 %s50, 1
        %s311 = scalar_lea.sflag [#allocation3], %s310
        %s312 = sand.u32 %s50, 1
        %s313 = smul.addr %s312, 8
        %s314 = scalar_lea.vmem [#allocation2], %s313
        %p315 = pneg %p63
        %p316 = pneg %p60
        %s317 = sand.u32 %s84, 1
        %s318 = scalar_lea.sflag [#allocation5], %s317
        %s319 = sand.u32 %s84, 1
        %s320 = smul.addr %s319, 8
        %s321 = scalar_lea.vmem [#allocation4], %s320
        %p322 = pneg %p97
        %p323 = pneg %p94
        %s324 = smul.u32 %s26, 2
        %s325 = sadd.s32 %s324, %s27
        %p326 = scmp.lt.s32.totalorder %s325, 2
        %s327 = scalar_select %p326, %s325, 2
        %s328 = smul.u32 2, %s327
        %s329 = ssub.s32 5, %s328
        %p330 = scmp.lt.s32.totalorder %s329, 2
        %s331 = scalar_select %p330, %s329, 2
        %s332 = smul.u32 64, %s331
        %p333 = scmp.lt.s32.totalorder %s328, 4
        %s334 = scalar_select %p333, %s328, 4
        %s335 = smul.addr %s334, 4
        %s336 = scalar_lea.vmem %s1, %s335
        %p337 = pneg %p131
        %p338 = pneg %p128
        %p339 = pneg %p157
        %p340 = pneg %p154
        %p341 = scmp.lt.s32.totalorder %s26, 1
        %s342 = scalar_select %p341, %s26, 1
        %s343 = smul.addr %s342, 2
        %s344 = smul.addr %s343, 4
        %s345 = scalar_lea.vmem %s3, %s344
        %p346 = pneg %p183
        %p347 = pneg %p180
        %p348 = scmp.lt.s32.totalorder %s26, 1
        %s349 = scalar_select %p348, %s26, 1
        %s350 = smul.addr %s349, 2
        %s351 = smul.addr %s350, 4
        %s352 = scalar_lea.vmem %s4, %s351
        %s353 = smul.u32 %s26, 2
        %s354 = sadd.s32 %s353, %s27
        %p355 = scmp.lt.s32.totalorder %s354, 2
        %s356 = scalar_select %p355, %s354, 2
        %s357 = smul.u32 2, %s356
        %s358 = ssub.s32 5, %s357
        %p359 = scmp.lt.s32.totalorder %s358, 2
        %s360 = scalar_select %p359, %s358, 2
        %s361 = smul.u32 64, %s360
        %s362 = smul.u32 %s26, 2
        %s363 = sadd.s32 %s362, %s27
        %p364 = scmp.lt.s32.totalorder %s363, 2
        %s365 = scalar_select %p364, %s363, 2
        %s366 = smul.u32 2, %s365
        %s367 = ssub.s32 5, %s366
        %p368 = scmp.lt.s32.totalorder %s367, 2
        %s369 = scalar_select %p368, %s367, 2
        %s370 = smul.u32 64, %s369
        %s371 = smul.u32 %s26, 2
        %s372 = sadd.s32 %s371, %s27
        %p373 = scmp.lt.s32.totalorder %s372, 2
        %s374 = scalar_select %p373, %s372, 2
        %s375 = smul.u32 2, %s374
        %s376 = ssub.s32 5, %s375
        %p377 = scmp.lt.s32.totalorder %s376, 2
        %s378 = scalar_select %p377, %s376, 2
        %s379 = smul.u32 64, %s378
        %p380 = scmp.lt.s32.totalorder %s375, 4
        %s381 = scalar_select %p380, %s375, 4
        %s382 = smul.addr %s381, 4
        %s383 = scalar_lea.vmem %s1, %s382
        %s384 = smul.u32 %s26, 2
        %s385 = sadd.s32 %s384, %s27
        %p386 = scmp.lt.s32.totalorder %s385, 2
        %s387 = scalar_select %p386, %s385, 2
        %s388 = smul.u32 2, %s387
        %s389 = ssub.s32 5, %s388
        %p390 = scmp.lt.s32.totalorder %s389, 2
        %s391 = scalar_select %p390, %s389, 2
        %s392 = smul.u32 64, %s391
        %p393 = scmp.lt.s32.totalorder %s26, 1
        %s394 = scalar_select %p393, %s26, 1
        %s395 = smul.addr %s394, 2
        %s396 = smul.addr %s395, 4
        %s397 = scalar_lea.vmem %s3, %s396
        %p398 = scmp.lt.s32.totalorder %s26, 1
        %s399 = scalar_select %p398, %s26, 1
        %s400 = smul.addr %s399, 2
        %s401 = smul.addr %s400, 4
        %s402 = scalar_lea.vmem %s4, %s401
        %v403 = vld [vmem:[%s305] sm:$0x7]
        %s405 = ssub.s32 16, 1
        %406 = vst [vmem:[#allocation6] sm:%s405] %v403
        %s407 = scalar_lea.vmem %s305, 4 [#allocation4]
        %v408 = vld [vmem:[%s407] sm:$0x7]
        %s409 = scalar_lea.vmem [#allocation6], 4
        %s411 = ssub.s32 16, 1
        %412 = vst [vmem:[%s409] sm:%s411] %v408
        %v413 = vld [vmem:[%s383] sm:$0x7]
        %s415 = ssub.s32 16, 1
        %416 = vst [vmem:[#allocation7] sm:%s415] %v413
        %s417 = scalar_lea.vmem %s383, 4
        %s418 = sadd.s32 %s388, 1
        %s419 = ssub.s32 4, %s418
        %p420 = scmp.lt.s32.totalorder %s419, 0
        %s421 = scalar_select %p420, 0, 255
        %s422 = sand.u32 15, %s421
        %s423 = sand.u32 7, %s422
        %v424 = vld [vmem:[%s417] sm:%s423]
        %s425 = scalar_lea.vmem [#allocation7], 4
        %s427 = ssub.s32 16, 1
        %428 = vst [vmem:[%s425] sm:%s427] %v424
        %p429 = scmp.eq.s32.totalorder %s27, 0
        // Predicated region
        $region41: #{ple_loss.2} parent=31 // pred_check
          %p430 = pneg %p429
        $region42: #{ple_loss.2} parent=31 // pred_check_branch
          %432 = sbr.rel (%p430) target = $region44
        $region43: #{ple_loss.2} parent=31 // pred_region
          %433 = vst [vmem:[%s397] sm:$0x77] 0.0
          %434 = vst [vmem:[%s402] sm:$0x77] 0.0
        $region44: #{ple_loss.2} parent=31 // pred_fallthru
          _
        %s435 = smul.u32 %s26, 2
        %s436 = sadd.s32 %s435, %s27
        %s437 = smul.u32 %s436, 256
        %v438 = vlaneseq
        %v439 = vand.u32 %v438, 127
        %v440 = vadd.s32 %v439, 128
        %v441 = vstv %s437
        %v442 = vadd.s32 %v441, %v439
        %v443 = vadd.s32 %v441, %v440
        %vm444 = vcmp.lt.s32.totalorder %v442, 600
        %vm445 = vcmp.lt.s32.totalorder %v443, 600
        %v446 = vld [vmem:[%s296] sm:$0x77]
        %v447 = vsel %vm444, 1, 0
        %v448 = vsel %vm445, 1, 0
        %vm449 = vcmp.eq.s32.totalorder %v447, 1
        %vm450 = vcmp.eq.s32.totalorder %v448, 1
        %v452 = vcombine.high %v446, %v446
        %v454 = vsel %vm449, %v446, 0.0
        %v455 = vsel %vm450, %v452, 0.0
        %v456 = vld [vmem:[#allocation6] sm:$0x77]
        %v458 = vcombine.high %v456, %v456
        %v460 = vsel %vm449, %v456, 0.0
        %v461 = vsel %vm450, %v458, 0.0
        %v462 = vld [vmem:[#allocation7] sm:$0x77]
        %v464 = vcombine.high %v462, %v462
        %v466 = vsel %vm449, %v462, 0.0
        %v467 = vsel %vm450, %v464, 0.0
        %vm468 = vcmask 1042432
        %v469 = vsel %vm468, %v454, 0.0
        %v470 = vrot.slane %v469, 4
        %v471 = vadd.f32 %v469, %v470
        %v472 = vrot.slane %v471, 2
        %v473 = vadd.f32 %v471, %v472
        %v474 = vrot.slane %v473, 1
        %v475 = vadd.f32 %v473, %v474
        %v476 = vsel %vm468, %v455, 0.0
        %v477 = vrot.slane %v476, 4
        %v478 = vadd.f32 %v476, %v477
        %v479 = vrot.slane %v478, 2
        %v480 = vadd.f32 %v478, %v479
        %v481 = vrot.slane %v480, 1
        %v482 = vadd.f32 %v480, %v481
        %v483 = vmax.f32 %v454, 0.0
        %v484 = vmax.f32 %v455, 0.0
        %v485 = vand.u32 2147483647, %v454
        %v486 = vand.u32 2147483647, %v455
        %v487 = vsub.f32 0.0, %v485
        %v488 = vsub.f32 0.0, %v486
        %v489 = vmul.f32 %v487, 1.442695
        %v490 = vpow.pop %v489
        %v491 = vmul.f32 %v488, 1.442695
        %v492 = vpow.pop %v491
        %v493 = vadd.f32 %v490, 1.0
        %v494 = vadd.f32 %v492, 1.0
        %v495 = vlog2.pop %v493
        %v496 = vmul.f32 %v495, 0.6931472
        %v497 = vlog2.pop %v494
        %v498 = vmul.f32 %v497, 0.6931472
        %v499 = vadd.f32 %v483, %v496
        %v500 = vadd.f32 %v484, %v498
        %v501 = vsel %vm468, %v499, 0.0
        %v502 = vrot.slane %v501, 4
        %v503 = vadd.f32 %v501, %v502
        %v504 = vrot.slane %v503, 2
        %v505 = vadd.f32 %v503, %v504
        %v506 = vrot.slane %v505, 1
        %v507 = vadd.f32 %v505, %v506
        %v508 = vsel %vm468, %v500, 0.0
        %v509 = vrot.slane %v508, 4
        %v510 = vadd.f32 %v508, %v509
        %v511 = vrot.slane %v510, 2
        %v512 = vadd.f32 %v510, %v511
        %v513 = vrot.slane %v512, 1
        %v514 = vadd.f32 %v512, %v513
        %v515 = vmul.f32 %v454, %v454
        %v516 = vmul.f32 %v455, %v455
        %v517 = vsel %vm468, %v515, 0.0
        %v518 = vrot.slane %v517, 4
        %v519 = vadd.f32 %v517, %v518
        %v520 = vrot.slane %v519, 2
        %v521 = vadd.f32 %v519, %v520
        %v522 = vrot.slane %v521, 1
        %v523 = vadd.f32 %v521, %v522
        %v524 = vsel %vm468, %v516, 0.0
        %v525 = vrot.slane %v524, 4
        %v526 = vadd.f32 %v524, %v525
        %v527 = vrot.slane %v526, 2
        %v528 = vadd.f32 %v526, %v527
        %v529 = vrot.slane %v528, 1
        %v530 = vadd.f32 %v528, %v529
        %v531 = vlaneseq
        %v532 = vshrl.u32 %v531, 7
        %vm533 = vcmp.lt.s32.totalorder %v532, 0
        %vm534 = vcmp.eq.s32.totalorder %v532, 0
        %vm535 = vmor %vm533, %vm534
        %vm536 = vcmp.eq.s32.totalorder %v532, 2
        %vm537 = vmor %vm535, %vm536
        %v538 = vmul.f32 %v460, %v475
        %v539 = vmul.f32 %v461, %v482
        %v540 = vsub.f32 %v507, %v538
        %v541 = vsub.f32 %v514, %v539
        %v542 = vmul.f32 %v460, 2.0
        %v543 = vmul.f32 %v461, 2.0
        %v544 = vmul.f32 %v542, %v475
        %v545 = vmul.f32 %v543, %v482
        %v546 = vsub.f32 %v523, %v544
        %v547 = vsub.f32 %v530, %v545
        %v548 = vmul.f32 %v460, 3.0
        %v549 = vmul.f32 %v461, 3.0
        %v550 = vmul.f32 %v548, %v460
        %v551 = vmul.f32 %v549, %v461
        %v552 = vadd.f32 %v546, %v550
        %v553 = vadd.f32 %v547, %v551
        %v554 = vsel %vm537, 1, 0
        %vm555 = vcmp.eq.s32.totalorder %v554, 1
        %v556 = vsel %vm555, %v540, %v552
        %v557 = vsel %vm555, %v541, %v553
        %v558 = vld [vmem:[%s397] sm:$0x77]
        %v559 = vmul.f32 %v466, %v556
        %v560 = vmul.f32 %v467, %v557
        %v563 = vcombine.low %v559, %v560
        %v565 = vadd.f32 %v558, %v563
        %566 = vst [vmem:[%s397] sm:$0x77] %v565
        %v567 = vld [vmem:[%s402] sm:$0x77]
        %v570 = vcombine.low %v466, %v467
        %v572 = vadd.f32 %v567, %v570
        %573 = vst [vmem:[%s402] sm:$0x77] %v572
        %p574 = scmp.lt.s32.totalorder %s26, 1
        %s575 = scalar_select %p574, %s26, 1
        %s576 = smul.addr %s575, 2
        %s577 = smul.addr %s576, 4
        %s578 = scalar_lea.vmem %s3, %s577
        %p579 = scmp.lt.s32.totalorder %s26, 1
        %s580 = scalar_select %p579, %s26, 1
        %s581 = smul.addr %s580, 2
        %s582 = smul.addr %s581, 4
        %s583 = scalar_lea.vmem %s4, %s582
        // Predicated region
        $region45: #{ple_loss.2} parent=31 // pred_check
          %p584 = pneg %p154
        $region46: #{ple_loss.2} parent=31 // pred_check_branch
          %586 = sbr.rel (%p584) target = $region48
        $region47: #{ple_loss.2} parent=31 // pred_region
          _
        $region48: #{ple_loss.2} parent=31 // pred_fallthru
          _
        // Predicated region
        $region49: #{ple_loss.2} parent=31 // pred_check
          %p587 = pneg %p180
        $region50: #{ple_loss.2} parent=31 // pred_check_branch
          %589 = sbr.rel (%p587) target = $region52
        $region51: #{ple_loss.2} parent=31 // pred_region
          _
        $region52: #{ple_loss.2} parent=31 // pred_fallthru
          _
      $region32: #{ple_loss.2} parent=5 // pred_fallthru
        _
      %p590 = scmp.le.s32.totalorder 2, %s17
      // Predicated region
      $region53: #{ple_loss.2} parent=5 // pred_check
        %p591 = pneg %p590
      $region54: #{ple_loss.2} parent=5 // pred_check_branch
        %593 = sbr.rel (%p591) target = $region56
      $region55: #{ple_loss.2} parent=5 // pred_region
        %s594 = ssub.s32 %s17, 2
        // Predicated region
        $region57: #{ple_loss.2} parent=55 // pred_check
          %p595 = pneg %p160
        $region58: #{ple_loss.2} parent=55 // pred_check_branch
          %597 = sbr.rel (%p595) target = $region60
        $region59: #{ple_loss.2} parent=55 // pred_region
          %p598 = scmp.lt.s32.totalorder %s28, 1
          %s599 = scalar_select %p598, %s28, 1
          %s600 = smul.addr %s599, 2
          %s601 = smul.addr %s600, 4
          %s602 = scalar_lea.vmem %s3, %s601
        $region60: #{ple_loss.2} parent=55 // pred_fallthru
          _
        // Predicated region
        $region61: #{ple_loss.2} parent=55 // pred_check
          %p603 = pneg %p186
        $region62: #{ple_loss.2} parent=55 // pred_check_branch
          %605 = sbr.rel (%p603) target = $region64
        $region63: #{ple_loss.2} parent=55 // pred_region
          %p606 = scmp.lt.s32.totalorder %s28, 1
          %s607 = scalar_select %p606, %s28, 1
          %s608 = smul.addr %s607, 2
          %s609 = smul.addr %s608, 4
          %s610 = scalar_lea.vmem %s4, %s609
        $region64: #{ple_loss.2} parent=55 // pred_fallthru
          _
      $region56: #{ple_loss.2} parent=5 // pred_fallthru
        _
    $region6: #{ple_loss.2} parent=1 // loop_footer
      %s21 = sadd.s32 1, %s17
    $region7: #{ple_loss.2} parent=1 // loop_footer_branch
      %16 = sbr.rel target = $region3
    $region8: #{ple_loss.2} parent=1 // loop_exit
      _
    %611 = vsyncpa [#allocation3], 1
    %s612 = scalar_lea.sflag [#allocation3], 1
    %613 = vsyncpa %s612, 1
    %614 = vsyncpa [#allocation5], 1
    %s615 = scalar_lea.sflag [#allocation5], 1
    %616 = vsyncpa %s615, 1

</llo_original>
